<compile_context>
chip_gen: v7x
topology: tpu7x:2x2x1
jax: 0.10.0
libtpu: 0.0.40
codegen_flags: <defaults>
</compile_context>

<pallas_src>
import functools

import jax
import jax.numpy as jnp
import numpy as np
from jax.experimental import pallas as pl
from jax.experimental.pallas import tpu as pltpu


def _round_up(v, m):
    return ((v + m - 1) // m) * m


def _vmem_limit(tile_bytes):
    # double-buffered tiles + headroom, capped at v7x's 64 MiB physical VMEM.
    return int(min(64 * 1024 * 1024, max(4 * 1024 * 1024, 4 * tile_bytes)))


# ---------------------------------------------------------------------------
# Kernels
# ---------------------------------------------------------------------------
def _gcn_layer_kernel(a_ref, x_ref, w_ref, b_ref, o_ref, *, apply_relu):
    # Row tile of one GCN layer:  o = act((Â_tile @ X) @ W + b)
    # (aggregate-first matches the reference association (Â @ X) @ Wᵀ exactly).
    ax = jnp.dot(a_ref[...], x_ref[...], preferred_element_type=jnp.float32)
    h = jnp.dot(ax, w_ref[...], preferred_element_type=jnp.float32) + b_ref[...]
    if apply_relu:
        h = jnp.maximum(h, 0.0)
    o_ref[...] = h


def _gram_kernel(hi_ref, hj_ref, o_ref):
    # out[i, j] tile = H2_i @ H2_jᵀ without an explicit XLU transpose.
    o_ref[...] = jax.lax.dot_general(
        hi_ref[...], hj_ref[...],
        dimension_numbers=(((1,), (1,)), ((), ())),
        preferred_element_type=jnp.float32,
    )


# ---------------------------------------------------------------------------
# pallas_call wrappers
# ---------------------------------------------------------------------------
def _gcn_layer(a_p, x_p, w_p, b_p, *, tm, apply_relu):
    n_pad = a_p.shape[0]
    f_in = x_p.shape[1]
    f_out = w_p.shape[1]
    nt = n_pad // tm

    flops = 2 * (n_pad * n_pad * f_in + n_pad * f_in * f_out)
    bytes_accessed = 4 * (
        n_pad * n_pad                      # Â row tiles
        + nt * (n_pad * f_in + f_in * f_out + f_out)  # X / W / b re-reads per tile
        + n_pad * f_out                    # output
    )
    tile_bytes = 4 * (tm * n_pad + n_pad * f_in + f_in * f_out + f_out + tm * f_out)

    kernel = functools.partial(_gcn_layer_kernel, apply_relu=apply_relu)
    return pl.pallas_call(
        kernel,
        out_shape=jax.ShapeDtypeStruct((n_pad, f_out), jnp.float32),
        grid=(nt,),
        in_specs=[
            pl.BlockSpec((tm, n_pad), lambda i: (i, 0)),   # Â row tile
            pl.BlockSpec((n_pad, f_in), lambda i: (0, 0)),  # full features
            pl.BlockSpec((f_in, f_out), lambda i: (0, 0)),  # weight (resident)
            pl.BlockSpec((1, f_out), lambda i: (0, 0)),     # bias row
        ],
        out_specs=pl.BlockSpec((tm, f_out), lambda i: (i, 0)),
        compiler_params=pltpu.CompilerParams(
            dimension_semantics=("parallel",),
            vmem_limit_bytes=_vmem_limit(tile_bytes),
        ),
        cost_estimate=pl.CostEstimate(
            flops=flops, transcendentals=0, bytes_accessed=bytes_accessed),
    )(a_p, x_p, w_p, b_p)


def _gram(h2_p, *, tm):
    n_pad, f_out = h2_p.shape
    nt = n_pad // tm

    flops = 2 * n_pad * n_pad * f_out
    bytes_accessed = 4 * (2 * nt * n_pad * f_out + n_pad * n_pad)
    tile_bytes = 4 * (2 * tm * f_out + tm * tm)

    return pl.pallas_call(
        _gram_kernel,
        out_shape=jax.ShapeDtypeStruct((n_pad, n_pad), jnp.float32),
        grid=(nt, nt),
        in_specs=[
            pl.BlockSpec((tm, f_out), lambda i, j: (i, 0)),
            pl.BlockSpec((tm, f_out), lambda i, j: (j, 0)),
        ],
        out_specs=pl.BlockSpec((tm, tm), lambda i, j: (i, j)),
        compiler_params=pltpu.CompilerParams(
            dimension_semantics=("parallel", "parallel"),
            vmem_limit_bytes=_vmem_limit(tile_bytes),
        ),
        cost_estimate=pl.CostEstimate(
            flops=flops, transcendentals=0, bytes_accessed=bytes_accessed),
    )(h2_p, h2_p)


# ---------------------------------------------------------------------------
# JAX glue (graph preprocessing + padding)
# ---------------------------------------------------------------------------
def gcn_norm_adj(edge_index, num_nodes):
    """Dense GCN-normalized adjacency with self-loops (matches PyG gcn_norm)."""
    src = edge_index[0]
    dst = edge_index[1]
    loops = jnp.arange(num_nodes, dtype=edge_index.dtype)
    src = jnp.concatenate([src, loops])
    dst = jnp.concatenate([dst, loops])
    # aggregation happens at the target node: Â[dst, src]
    a = jnp.zeros((num_nodes, num_nodes), jnp.float32).at[dst, src].add(1.0)
    deg = jnp.sum(a, axis=1)
    dis = jnp.where(deg > 0, jax.lax.rsqrt(deg), 0.0)
    return dis[:, None] * a * dis[None, :]


def graph_to_graph(x, edge_index, w1, b1, w2, b2):
    """x: [N, in_dim]; edge_index: [2, E] int32.  Returns [N, N] float32."""
    n, in_dim = x.shape
    hid = w1.shape[0]
    out_dim = w2.shape[0]

    a_hat = gcn_norm_adj(edge_index, n)

    # Lane-dense padding: node dim and every feature dim go to multiples of 128
    # so all matmul operands / outputs are full (8, 128) tiles.  Padded
    # rows/cols are zero, so the top-left [N, N] block of the result is exact.
    n_pad = max(128, _round_up(n, 128))
    in_pad = max(128, _round_up(in_dim, 128))
    hid_pad = max(128, _round_up(hid, 128))
    out_pad = max(128, _round_up(out_dim, 128))

    a_p = jnp.zeros((n_pad, n_pad), jnp.float32).at[:n, :n].set(a_hat)
    x_p = jnp.zeros((n_pad, in_pad), jnp.float32).at[:n, :in_dim].set(
        x.astype(jnp.float32))
    w1_p = jnp.zeros((in_pad, hid_pad), jnp.float32).at[:in_dim, :hid].set(
        w1.T.astype(jnp.float32))
    b1_p = jnp.zeros((1, hid_pad), jnp.float32).at[0, :hid].set(
        b1.astype(jnp.float32))
    w2_p = jnp.zeros((hid_pad, out_pad), jnp.float32).at[:hid, :out_dim].set(
        w2.T.astype(jnp.float32))
    b2_p = jnp.zeros((1, out_pad), jnp.float32).at[0, :out_dim].set(
        b2.astype(jnp.float32))

    # Row-tile size: biggest aligned tile that divides n_pad.
    tm = 256 if n_pad % 256 == 0 else 128

    # GCN layer 1: H1 = relu(Â @ X @ W1ᵀ + b1)      (row-tiled over nodes)
    h1 = _gcn_layer(a_p, x_p, w1_p, b1_p, tm=tm, apply_relu=True)
    # GCN layer 2: H2 = Â @ H1 @ W2ᵀ + b2
    h2 = _gcn_layer(a_p, h1, w2_p, b2_p, tm=tm, apply_relu=False)
    # Decoder: out = H2 @ H2ᵀ                        ((i, j)-tiled Gram matrix)
    out_p = _gram(h2, tm=tm)

    return out_p[:n, :n]


def _reference(x, edge_index, w1, b1, w2, b2):
    a_hat = gcn_norm_adj(edge_index, x.shape[0])
    h1 = jax.nn.relu(a_hat @ x @ w1.T + b1)
    h2 = a_hat @ h1 @ w2.T + b2
    return h2 @ h2.T


if __name__ == "__main__":
    num_nodes = 12
    input_dim = 4
    hidden_dim = 32
    output_dim = 16

    key = jax.random.PRNGKey(0)
    k_x, k_w1, k_b1, k_w2, k_b2 = jax.random.split(key, 5)

    # node features (torch.rand equivalent: uniform [0, 1))
    x = jax.random.uniform(k_x, (num_nodes, input_dim), dtype=jnp.float32)

    # deterministic ring graph, both directions; reshape(2, -1) like the script
    src = np.arange(num_nodes)
    dst = (src + 1) % num_nodes
    ei = np.stack([np.concatenate([src, dst]), np.concatenate([dst, src])])
    edge_index = jnp.asarray(ei.reshape(2, -1), dtype=jnp.int32)

    # deterministic parameter init (glorot-ish for weights, zeros for biases)
    w1 = jax.random.normal(k_w1, (hidden_dim, input_dim), jnp.float32) * (
        1.0 / jnp.sqrt(input_dim))
    b1 = jnp.zeros((hidden_dim,), jnp.float32)
    w2 = jax.random.normal(k_w2, (output_dim, hidden_dim), jnp.float32) * (
        1.0 / jnp.sqrt(hidden_dim))
    b2 = jnp.zeros((output_dim,), jnp.float32)

    out = graph_to_graph(x, edge_index, w1, b1, w2, b2)
    out = jax.block_until_ready(out)

    ref = _reference(x, edge_index, w1, b1, w2, b2)
    assert out.shape == (num_nodes, num_nodes)
    assert jnp.allclose(out, ref, atol=1e-4, rtol=1e-4), "mismatch vs JAX reference"

    print("KERNEL_OK")
</pallas_src>

<mosaic_0001>
module attributes {stable_mosaic.version = 11 : i64} {
  func.func @_gcn_layer_kernel(%arg0: i32, %arg1: memref<128x128xf32, #tpu.memory_space<vmem>>, %arg2: memref<128x128xf32, #tpu.memory_space<vmem>>, %arg3: memref<128x128xf32, #tpu.memory_space<vmem>>, %arg4: memref<1x128xf32, #tpu.memory_space<vmem>>, %arg5: memref<128x128xf32, #tpu.memory_space<vmem>>) attributes {dimension_semantics = [#tpu.dimension_semantics<parallel>], iteration_bounds = array<i64: 1>, scalar_prefetch = 0 : i64, scratch_operands = 0 : i64, tpu.core_type = #tpu.core_type<tc>, window_params = [{transform_indices = @transform_0, window_bounds = array<i64: 128, 128>}, {pipeline_mode = #tpu.pipeline_mode<synchronous>, transform_indices = @transform_1, window_bounds = array<i64: 128, 128>}, {pipeline_mode = #tpu.pipeline_mode<synchronous>, transform_indices = @transform_2, window_bounds = array<i64: 128, 128>}, {pipeline_mode = #tpu.pipeline_mode<synchronous>, transform_indices = @transform_3, window_bounds = array<i64: 1, 128>}, {transform_indices = @transform_4, window_bounds = array<i64: 128, 128>}]} {
    %c0 = arith.constant 0 : index
    %c0_0 = arith.constant 0 : index
    %0 = vector.load %arg1[%c0, %c0_0] : memref<128x128xf32, #tpu.memory_space<vmem>>, vector<128x128xf32>
    %c0_1 = arith.constant 0 : index
    %c0_2 = arith.constant 0 : index
    %1 = vector.load %arg2[%c0_1, %c0_2] : memref<128x128xf32, #tpu.memory_space<vmem>>, vector<128x128xf32>
    %cst = arith.constant dense<0.000000e+00> : vector<128x128xf32>
    %2 = tpu.matmul %0, %1, %cst {dimension_numbers = #tpu.dot_dimension_numbers<[1], [0], [0], [1], [0, 0, 1, 1], [], []>} : vector<128x128xf32>, vector<128x128xf32>, vector<128x128xf32> -> vector<128x128xf32>
    %c0_3 = arith.constant 0 : index
    %c0_4 = arith.constant 0 : index
    %3 = vector.load %arg3[%c0_3, %c0_4] : memref<128x128xf32, #tpu.memory_space<vmem>>, vector<128x128xf32>
    %cst_5 = arith.constant dense<0.000000e+00> : vector<128x128xf32>
    %4 = tpu.matmul %2, %3, %cst_5 {dimension_numbers = #tpu.dot_dimension_numbers<[1], [0], [0], [1], [0, 0, 1, 1], [], []>} : vector<128x128xf32>, vector<128x128xf32>, vector<128x128xf32> -> vector<128x128xf32>
    %c0_6 = arith.constant 0 : index
    %c0_7 = arith.constant 0 : index
    %5 = vector.load %arg4[%c0_6, %c0_7] : memref<1x128xf32, #tpu.memory_space<vmem>>, vector<1x128xf32>
    %6 = vector.broadcast %5 : vector<1x128xf32> to vector<128x128xf32>
    %7 = arith.addf %4, %6 : vector<128x128xf32>
    %cst_8 = arith.constant 0.000000e+00 : f32
    %8 = vector.broadcast %cst_8 : f32 to vector<128x128xf32>
    %9 = arith.maximumf %7, %8 : vector<128x128xf32>
    %c0_9 = arith.constant 0 : index
    %c0_10 = arith.constant 0 : index
    %10 = vector.load %arg5[%c0_9, %c0_10] : memref<128x128xf32, #tpu.memory_space<vmem>>, vector<128x128xf32>
    tpu.vector_store %arg5[%c0_9, %c0_10], %9 {strides = array<i32>} : memref<128x128xf32, #tpu.memory_space<vmem>>, vector<128x128xf32>,
    return
  }
  func.func @transform_0(%arg0: i32) -> (i32, i32) {
    %c0_i32 = arith.constant 0 : i32
    %c0_i32_0 = arith.constant 0 : i32
    return %arg0, %c0_i32 : i32, i32
  }
  func.func @transform_1(%arg0: i32) -> (i32, i32) {
    %c0_i32 = arith.constant 0 : i32
    %c0_i32_0 = arith.constant 0 : i32
    %c0_i32_1 = arith.constant 0 : i32
    return %c0_i32, %c0_i32_0 : i32, i32
  }
  func.func @transform_2(%arg0: i32) -> (i32, i32) {
    %c0_i32 = arith.constant 0 : i32
    %c0_i32_0 = arith.constant 0 : i32
    %c0_i32_1 = arith.constant 0 : i32
    return %c0_i32, %c0_i32_0 : i32, i32
  }
  func.func @transform_3(%arg0: i32) -> (i32, i32) {
    %c0_i32 = arith.constant 0 : i32
    %c0_i32_0 = arith.constant 0 : i32
    %c0_i32_1 = arith.constant 0 : i32
    return %c0_i32, %c0_i32_0 : i32, i32
  }
  func.func @transform_4(%arg0: i32) -> (i32, i32) {
    %c0_i32 = arith.constant 0 : i32
    %c0_i32_0 = arith.constant 0 : i32
    return %arg0, %c0_i32 : i32, i32
  }
}

</mosaic_0001>

<llo_original>
// kernel: tpu_custom_call.1
$region0: #{tpu_custom_call.1}
  #allocation0 [shape = 'u32[]', space=smem, size = 0x4, offset = 0x4, fixed_abs, tag = 'smem constant byte address 0x4 - core index']
  #allocation1 [shape = 'u32[144,128]{1,0:T(1,128)}', space=vmem, size = 0x12000, scoped, tag = 'internal scratch']
  %s0 = inlined_call_operand.hbm [shape: f32[128,128], index: 0, kind: input, shape index: {}]
  %s1 = inlined_call_operand.hbm [shape: f32[128,128], index: 1, kind: input, shape index: {}]
  %s2 = inlined_call_operand.hbm [shape: f32[128,128], index: 2, kind: input, shape index: {}]
  %s3 = inlined_call_operand.vmem [shape: f32[1,128], index: 3, kind: input, shape index: {}]
  %s4 = inlined_call_operand.hbm [shape: f32[128,128], index: 4, kind: output, shape index: {}]
  %s5 = sld [smem:[#allocation0]]
  $region38: #{tpu_custom_call.1} parent=0
    _
  %s7 = ssub.s32 1, %s5
  %s8 = scalar_select 0, %s7, %s5
  $region1: #{tpu_custom_call.1} parent=0
    #allocation2 [shape = 'u8[65536]{0}', space=vmem, size = 0x10000, scoped, tag = 'input window, operand 0, single buffered']
    #allocation3 [shape = 's32[1]{0}', space=sflag, size = 0x4, scoped, tag = 'scoped memory for tpu_custom_call.1']
    #allocation4 [shape = 's32[1]{0}', space=sflag, size = 0x4, scoped, tag = 'scoped memory for tpu_custom_call.1']
    #allocation5 [shape = 'u8[65536]{0}', space=vmem, size = 0x10000, scoped, tag = 'input window, operand 1, single buffered']
    #allocation6 [shape = 's32[1]{0}', space=sflag, size = 0x4, scoped, tag = 'scoped memory for tpu_custom_call.1']
    #allocation7 [shape = 'u8[65536]{0}', space=vmem, size = 0x10000, scoped, tag = 'input window, operand 2, single buffered']
    #allocation8 [shape = 'u8[65536]{0}', space=vmem, size = 0x10000, scoped, tag = 'output window, operand 0, single buffered']
    %9 = vsyncpa [#allocation3], 0
    %10 = vsyncpa [#allocation6], 0
    %11 = vsyncpa [#allocation4], 0
    // Predicated region
    $region2: #{tpu_custom_call.1} parent=1 // pred_check
      _
    $region3: #{tpu_custom_call.1} parent=1 // pred_check_branch
      %13 = sbr.rel (0) target = $region5
    $region4: #{tpu_custom_call.1} parent=1 // pred_region
      %s15 = ssub.s32 2048, 2048
      %16 = vsyncadd [#allocation3], %s15
      %s17 = sshll.u32 [#allocation2], 4
      %s18 = int_to_ptr.vmem [resolvable:$true] %s17
      %23 = dma.hbm_to_vmem [thread:$0]  %s0, 2048, %s18, [#allocation3], 128, 128, 8
    $region5: #{tpu_custom_call.1} parent=1 // pred_fallthru
      _
    // Predicated region
    $region6: #{tpu_custom_call.1} parent=1 // pred_check
      _
    $region7: #{tpu_custom_call.1} parent=1 // pred_check_branch
      %25 = sbr.rel (0) target = $region9
    $region8: #{tpu_custom_call.1} parent=1 // pred_region
      %s27 = ssub.s32 2048, 2048
      %28 = vsyncadd [#allocation6], %s27
      %s29 = sshll.u32 [#allocation5], 4
      %s30 = int_to_ptr.vmem [resolvable:$true] %s29
      %35 = dma.hbm_to_vmem [thread:$0]  %s1, 2048, %s30, [#allocation6], 128, 128, 8
    $region9: #{tpu_custom_call.1} parent=1 // pred_fallthru
      _
    // Predicated region
    $region10: #{tpu_custom_call.1} parent=1 // pred_check
      _
    $region11: #{tpu_custom_call.1} parent=1 // pred_check_branch
      %37 = sbr.rel (0) target = $region13
    $region12: #{tpu_custom_call.1} parent=1 // pred_region
      %s39 = ssub.s32 2048, 2048
      %40 = vsyncadd [#allocation6], %s39
      %s41 = sshll.u32 [#allocation7], 4
      %s42 = int_to_ptr.vmem [resolvable:$true] %s41
      %47 = dma.hbm_to_vmem [thread:$0]  %s2, 2048, %s42, [#allocation6], 128, 128, 8
    $region13: #{tpu_custom_call.1} parent=1 // pred_fallthru
      _
    // Predicated region
    $region14: #{tpu_custom_call.1} parent=1 // pred_check
      _
    $region15: #{tpu_custom_call.1} parent=1 // pred_check_branch
      %49 = sbr.rel (0) target = $region17
    $region16: #{tpu_custom_call.1} parent=1 // pred_region
      _
    $region17: #{tpu_custom_call.1} parent=1 // pred_fallthru
      _
    // Predicated region
    $region18: #{tpu_custom_call.1} parent=1 // pred_check
      _
    $region19: #{tpu_custom_call.1} parent=1 // pred_check_branch
      %51 = sbr.rel (0) target = $region21
    $region20: #{tpu_custom_call.1} parent=1 // pred_region
      %52 = dma.done [#allocation3], 2048
    $region21: #{tpu_custom_call.1} parent=1 // pred_fallthru
      _
    // Predicated region
    $region22: #{tpu_custom_call.1} parent=1 // pred_check
      _
    $region23: #{tpu_custom_call.1} parent=1 // pred_check_branch
      %54 = sbr.rel (0) target = $region25
    $region24: #{tpu_custom_call.1} parent=1 // pred_region
      %55 = dma.done [#allocation6], 2048
    $region25: #{tpu_custom_call.1} parent=1 // pred_fallthru
      _
    // Predicated region
    $region26: #{tpu_custom_call.1} parent=1 // pred_check
      _
    $region27: #{tpu_custom_call.1} parent=1 // pred_check_branch
      %57 = sbr.rel (0) target = $region29
    $region28: #{tpu_custom_call.1} parent=1 // pred_region
      %58 = dma.done [#allocation6], 2048
    $region29: #{tpu_custom_call.1} parent=1 // pred_fallthru
      _
    %v59 = vld [vmem:[#allocation2] sm:$0xff]
    %v60 = vld [vmem:[#allocation2 + $0x8] sm:$0xff]
    %v61 = vld [vmem:[#allocation2 + $0x10] sm:$0xff]
    %v62 = vld [vmem:[#allocation2 + $0x18] sm:$0xff]
    %v63 = vld [vmem:[#allocation2 + $0x20] sm:$0xff]
    %v64 = vld [vmem:[#allocation2 + $0x28] sm:$0xff]
    %v65 = vld [vmem:[#allocation2 + $0x30] sm:$0xff]
    %v66 = vld [vmem:[#allocation2 + $0x38] sm:$0xff]
    %v67 = vld [vmem:[#allocation2 + $0x40] sm:$0xff]
    %v68 = vld [vmem:[#allocation2 + $0x48] sm:$0xff]
    %v69 = vld [vmem:[#allocation2 + $0x50] sm:$0xff]
    %v70 = vld [vmem:[#allocation2 + $0x58] sm:$0xff]
    %v71 = vld [vmem:[#allocation2 + $0x60] sm:$0xff]
    %v72 = vld [vmem:[#allocation2 + $0x68] sm:$0xff]
    %v73 = vld [vmem:[#allocation2 + $0x70] sm:$0xff]
    %v74 = vld [vmem:[#allocation2 + $0x78] sm:$0xff]
    %v75 = vld [vmem:[#allocation5] sm:$0xff]
    %v76 = vld [vmem:[#allocation5 + $0x8] sm:$0xff]
    %v77 = vld [vmem:[#allocation5 + $0x10] sm:$0xff]
    %v78 = vld [vmem:[#allocation5 + $0x18] sm:$0xff]
    %v79 = vld [vmem:[#allocation5 + $0x20] sm:$0xff]
    %v80 = vld [vmem:[#allocation5 + $0x28] sm:$0xff]
    %v81 = vld [vmem:[#allocation5 + $0x30] sm:$0xff]
    %v82 = vld [vmem:[#allocation5 + $0x38] sm:$0xff]
    %v83 = vld [vmem:[#allocation5 + $0x40] sm:$0xff]
    %v84 = vld [vmem:[#allocation5 + $0x48] sm:$0xff]
    %v85 = vld [vmem:[#allocation5 + $0x50] sm:$0xff]
    %v86 = vld [vmem:[#allocation5 + $0x58] sm:$0xff]
    %v87 = vld [vmem:[#allocation5 + $0x60] sm:$0xff]
    %v88 = vld [vmem:[#allocation5 + $0x68] sm:$0xff]
    %v89 = vld [vmem:[#allocation5 + $0x70] sm:$0xff]
    %v90 = vld [vmem:[#allocation5 + $0x78] sm:$0xff]
    %91 = vmatprep.subr.mxu0 0.0
    %92 = vmatpush1.msra.mxu0 %v75
    %93 = vmatprep.subr.mxu0 0.0
    %94 = vmatpush1.msra.mxu0 %v76
    %95 = vmatprep.subr.mxu0 0.0
    %96 = vmatpush1.msra.mxu0 %v77
    %97 = vmatprep.subr.mxu0 0.0
    %98 = vmatpush1.msra.mxu0 %v78
    %99 = vmatprep.subr.mxu0 0.0
    %100 = vmatpush1.msra.mxu0 %v79
    %101 = vmatprep.subr.mxu0 0.0
    %102 = vmatpush1.msra.mxu0 %v80
    %103 = vmatprep.subr.mxu0 0.0
    %104 = vmatpush1.msra.mxu0 %v81
    %105 = vmatprep.subr.mxu0 0.0
    %106 = vmatpush1.msra.mxu0 %v82
    %107 = vmatprep.subr.mxu0 0.0
    %108 = vmatpush1.msra.mxu0 %v83
    %109 = vmatprep.subr.mxu0 0.0
    %110 = vmatpush1.msra.mxu0 %v84
    %111 = vmatprep.subr.mxu0 0.0
    %112 = vmatpush1.msra.mxu0 %v85
    %113 = vmatprep.subr.mxu0 0.0
    %114 = vmatpush1.msra.mxu0 %v86
    %115 = vmatprep.subr.mxu0 0.0
    %116 = vmatpush1.msra.mxu0 %v87
    %117 = vmatprep.subr.mxu0 0.0
    %118 = vmatpush1.msra.mxu0 %v88
    %119 = vmatprep.subr.mxu0 0.0
    %120 = vmatpush1.msra.mxu0 %v89
    %121 = vmatprep.subr.mxu0 0.0
    %122 = vmatpush1.msra.mxu0 %v90
    %123 = vmatprep.subr.mxu0 0.0
    %124 = vmatpush1.msra.mxu0 0.0
    %125 = vmatprep.subr.mxu0 0.0
    %126 = vmatpush1.msra.mxu0 0.0
    %127 = vmatprep.subr.mxu0 0.0
    %128 = vmatpush1.msra.mxu0 0.0
    %129 = vmatprep.subr.mxu0 0.0
    %130 = vmatpush1.msra.mxu0 0.0
    %131 = vmatprep.subr.mxu0 0.0
    %132 = vmatpush1.msra.mxu0 0.0
    %133 = vmatprep.subr.mxu0 0.0
    %134 = vmatpush1.msra.mxu0 0.0
    %135 = vmatprep.subr.mxu0 0.0
    %136 = vmatpush1.msra.mxu0 0.0
    %137 = vmatprep.subr.mxu0 0.0
    %138 = vmatpush1.msra.mxu0 0.0
    %139 = vmatprep.subr.mxu0 0.0
    %140 = vmatpush1.msra.mxu0 0.0
    %141 = vmatprep.subr.mxu0 0.0
    %142 = vmatpush1.msra.mxu0 0.0
    %143 = vmatprep.subr.mxu0 0.0
    %144 = vmatpush1.msra.mxu0 0.0
    %145 = vmatprep.subr.mxu0 0.0
    %146 = vmatpush1.msra.mxu0 0.0
    %147 = vmatprep.subr.mxu0 0.0
    %148 = vmatpush1.msra.mxu0 0.0
    %149 = vmatprep.subr.mxu0 0.0
    %150 = vmatpush1.msra.mxu0 0.0
    %151 = vmatprep.subr.mxu0 0.0
    %152 = vmatpush1.msra.mxu0 0.0
    %153 = vmatprep.subr.mxu0 0.0
    %154 = vmatpush1.msra.mxu0 0.0
    %155 = vmatprep.mubr.f32.mxu0 0.0
    %156 = vmatmul.mubr.f32.gmra.mrb[0].mxu0 %v59
    %v157 = vpop.f32.mrb[0].mxu0
    %v158 = vadd.f32 0.0, %v157
    %v159 = vpop.f32.mrb[0].mxu0
    %160 = vmatprep.mubr.f32.mxu0 0.0
    %161 = vmatmul.mubr.f32.gmra.mrb[0].mxu0 %v60
    %v162 = vpop.f32.mrb[0].mxu0
    %v163 = vadd.f32 0.0, %v162
    %v164 = vpop.f32.mrb[0].mxu0
    %165 = vmatprep.mubr.f32.mxu0 0.0
    %166 = vmatmul.mubr.f32.gmra.mrb[0].mxu0 %v61
    %v167 = vpop.f32.mrb[0].mxu0
    %v168 = vadd.f32 0.0, %v167
    %v169 = vpop.f32.mrb[0].mxu0
    %170 = vmatprep.mubr.f32.mxu0 0.0
    %171 = vmatmul.mubr.f32.gmra.mrb[0].mxu0 %v62
    %v172 = vpop.f32.mrb[0].mxu0
    %v173 = vadd.f32 0.0, %v172
    %v174 = vpop.f32.mrb[0].mxu0
    %175 = vmatprep.mubr.f32.mxu0 0.0
    %176 = vmatmul.mubr.f32.gmra.mrb[0].mxu0 %v63
    %v177 = vpop.f32.mrb[0].mxu0
    %v178 = vadd.f32 0.0, %v177
    %v179 = vpop.f32.mrb[0].mxu0
    %180 = vmatprep.mubr.f32.mxu0 0.0
    %181 = vmatmul.mubr.f32.gmra.mrb[0].mxu0 %v64
    %v182 = vpop.f32.mrb[0].mxu0
    %v183 = vadd.f32 0.0, %v182
    %v184 = vpop.f32.mrb[0].mxu0
    %185 = vmatprep.mubr.f32.mxu0 0.0
    %186 = vmatmul.mubr.f32.gmra.mrb[0].mxu0 %v65
    %v187 = vpop.f32.mrb[0].mxu0
    %v188 = vadd.f32 0.0, %v187
    %v189 = vpop.f32.mrb[0].mxu0
    %190 = vmatprep.mubr.f32.mxu0 0.0
    %191 = vmatmul.mubr.f32.gmra.mrb[0].mxu0 %v66
    %v192 = vpop.f32.mrb[0].mxu0
    %v193 = vadd.f32 0.0, %v192
    %v194 = vpop.f32.mrb[0].mxu0
    %195 = vmatprep.mubr.f32.mxu0 0.0
    %196 = vmatmul.mubr.f32.gmra.mrb[0].mxu0 %v67
    %v197 = vpop.f32.mrb[0].mxu0
    %v198 = vadd.f32 0.0, %v197
    %v199 = vpop.f32.mrb[0].mxu0
    %200 = vmatprep.mubr.f32.mxu0 0.0
    %201 = vmatmul.mubr.f32.gmra.mrb[0].mxu0 %v68
    %v202 = vpop.f32.mrb[0].mxu0
    %v203 = vadd.f32 0.0, %v202
    %v204 = vpop.f32.mrb[0].mxu0
    %205 = vmatprep.mubr.f32.mxu0 0.0
    %206 = vmatmul.mubr.f32.gmra.mrb[0].mxu0 %v69
    %v207 = vpop.f32.mrb[0].mxu0
    %v208 = vadd.f32 0.0, %v207
    %v209 = vpop.f32.mrb[0].mxu0
    %210 = vmatprep.mubr.f32.mxu0 0.0
    %211 = vmatmul.mubr.f32.gmra.mrb[0].mxu0 %v70
    %v212 = vpop.f32.mrb[0].mxu0
    %v213 = vadd.f32 0.0, %v212
    %v214 = vpop.f32.mrb[0].mxu0
    %215 = vmatprep.mubr.f32.mxu0 0.0
    %216 = vmatmul.mubr.f32.gmra.mrb[0].mxu0 %v71
    %v217 = vpop.f32.mrb[0].mxu0
    %v218 = vadd.f32 0.0, %v217
    %v219 = vpop.f32.mrb[0].mxu0
    %220 = vmatprep.mubr.f32.mxu0 0.0
    %221 = vmatmul.mubr.f32.gmra.mrb[0].mxu0 %v72
    %v222 = vpop.f32.mrb[0].mxu0
    %v223 = vadd.f32 0.0, %v222
    %v224 = vpop.f32.mrb[0].mxu0
    %225 = vmatprep.mubr.f32.mxu0 0.0
    %226 = vmatmul.mubr.f32.gmra.mrb[0].mxu0 %v73
    %v227 = vpop.f32.mrb[0].mxu0
    %v228 = vadd.f32 0.0, %v227
    %v229 = vpop.f32.mrb[0].mxu0
    %230 = vmatprep.mubr.f32.mxu0 0.0
    %231 = vmatmul.mubr.f32.gmra.mrb[0].mxu0 %v74
    %v232 = vpop.f32.mrb[0].mxu0
    %v233 = vadd.f32 0.0, %v232
    %v234 = vpop.f32.mrb[0].mxu0
    %235 = vdwg.mxu0
    %v236 = vld [vmem:[#allocation7] sm:$0xff]
    %v237 = vld [vmem:[#allocation7 + $0x8] sm:$0xff]
    %v238 = vld [vmem:[#allocation7 + $0x10] sm:$0xff]
    %v239 = vld [vmem:[#allocation7 + $0x18] sm:$0xff]
    %v240 = vld [vmem:[#allocation7 + $0x20] sm:$0xff]
    %v241 = vld [vmem:[#allocation7 + $0x28] sm:$0xff]
    %v242 = vld [vmem:[#allocation7 + $0x30] sm:$0xff]
    %v243 = vld [vmem:[#allocation7 + $0x38] sm:$0xff]
    %v244 = vld [vmem:[#allocation7 + $0x40] sm:$0xff]
    %v245 = vld [vmem:[#allocation7 + $0x48] sm:$0xff]
    %v246 = vld [vmem:[#allocation7 + $0x50] sm:$0xff]
    %v247 = vld [vmem:[#allocation7 + $0x58] sm:$0xff]
    %v248 = vld [vmem:[#allocation7 + $0x60] sm:$0xff]
    %v249 = vld [vmem:[#allocation7 + $0x68] sm:$0xff]
    %v250 = vld [vmem:[#allocation7 + $0x70] sm:$0xff]
    %v251 = vld [vmem:[#allocation7 + $0x78] sm:$0xff]
    %v252 = vld [vmem:[%s3] sm:$0x1]
    %v254 = vlaneseq
    %v255 = vshrl.u32 %v254, 7
    %v256 = vsub.s32 0, %v255
    %v257 = vrot.slane %v252, %v256
    %259 = vmatprep.subr.mxu0 0.0
    %260 = vmatpush1.msra.mxu0 %v236
    %261 = vmatprep.subr.mxu0 0.0
    %262 = vmatpush1.msra.mxu0 %v237
    %263 = vmatprep.subr.mxu0 0.0
    %264 = vmatpush1.msra.mxu0 %v238
    %265 = vmatprep.subr.mxu0 0.0
    %266 = vmatpush1.msra.mxu0 %v239
    %267 = vmatprep.subr.mxu0 0.0
    %268 = vmatpush1.msra.mxu0 %v240
    %269 = vmatprep.subr.mxu0 0.0
    %270 = vmatpush1.msra.mxu0 %v241
    %271 = vmatprep.subr.mxu0 0.0
    %272 = vmatpush1.msra.mxu0 %v242
    %273 = vmatprep.subr.mxu0 0.0
    %274 = vmatpush1.msra.mxu0 %v243
    %275 = vmatprep.subr.mxu0 0.0
    %276 = vmatpush1.msra.mxu0 %v244
    %277 = vmatprep.subr.mxu0 0.0
    %278 = vmatpush1.msra.mxu0 %v245
    %279 = vmatprep.subr.mxu0 0.0
    %280 = vmatpush1.msra.mxu0 %v246
    %281 = vmatprep.subr.mxu0 0.0
    %282 = vmatpush1.msra.mxu0 %v247
    %283 = vmatprep.subr.mxu0 0.0
    %284 = vmatpush1.msra.mxu0 %v248
    %285 = vmatprep.subr.mxu0 0.0
    %286 = vmatpush1.msra.mxu0 %v249
    %287 = vmatprep.subr.mxu0 0.0
    %288 = vmatpush1.msra.mxu0 %v250
    %289 = vmatprep.subr.mxu0 0.0
    %290 = vmatpush1.msra.mxu0 %v251
    %291 = vmatprep.subr.mxu0 0.0
    %292 = vmatpush1.msra.mxu0 0.0
    %293 = vmatprep.subr.mxu0 0.0
    %294 = vmatpush1.msra.mxu0 0.0
    %295 = vmatprep.subr.mxu0 0.0
    %296 = vmatpush1.msra.mxu0 0.0
    %297 = vmatprep.subr.mxu0 0.0
    %298 = vmatpush1.msra.mxu0 0.0
    %299 = vmatprep.subr.mxu0 0.0
    %300 = vmatpush1.msra.mxu0 0.0
    %301 = vmatprep.subr.mxu0 0.0
    %302 = vmatpush1.msra.mxu0 0.0
    %303 = vmatprep.subr.mxu0 0.0
    %304 = vmatpush1.msra.mxu0 0.0
    %305 = vmatprep.subr.mxu0 0.0
    %306 = vmatpush1.msra.mxu0 0.0
    %307 = vmatprep.subr.mxu0 0.0
    %308 = vmatpush1.msra.mxu0 0.0
    %309 = vmatprep.subr.mxu0 0.0
    %310 = vmatpush1.msra.mxu0 0.0
    %311 = vmatprep.subr.mxu0 0.0
    %312 = vmatpush1.msra.mxu0 0.0
    %313 = vmatprep.subr.mxu0 0.0
    %314 = vmatpush1.msra.mxu0 0.0
    %315 = vmatprep.subr.mxu0 0.0
    %316 = vmatpush1.msra.mxu0 0.0
    %317 = vmatprep.subr.mxu0 0.0
    %318 = vmatpush1.msra.mxu0 0.0
    %319 = vmatprep.subr.mxu0 0.0
    %320 = vmatpush1.msra.mxu0 0.0
    %321 = vmatprep.subr.mxu0 0.0
    %322 = vmatpush1.msra.mxu0 0.0
    %323 = vmatprep.mubr.f32.mxu0 0.0
    %324 = vmatmul.mubr.f32.gmra.mrb[0].mxu0 %v158
    %v325 = vpop.f32.mrb[0].mxu0
    %v326 = vadd.f32 %v257, %v325
    %v327 = vpop.f32.mrb[0].mxu0
    %328 = vmatprep.mubr.f32.mxu0 0.0
    %329 = vmatmul.mubr.f32.gmra.mrb[0].mxu0 %v163
    %v330 = vpop.f32.mrb[0].mxu0
    %v331 = vadd.f32 %v257, %v330
    %v332 = vpop.f32.mrb[0].mxu0
    %333 = vmatprep.mubr.f32.mxu0 0.0
    %334 = vmatmul.mubr.f32.gmra.mrb[0].mxu0 %v168
    %v335 = vpop.f32.mrb[0].mxu0
    %v336 = vadd.f32 %v257, %v335
    %v337 = vpop.f32.mrb[0].mxu0
    %338 = vmatprep.mubr.f32.mxu0 0.0
    %339 = vmatmul.mubr.f32.gmra.mrb[0].mxu0 %v173
    %v340 = vpop.f32.mrb[0].mxu0
    %v341 = vadd.f32 %v257, %v340
    %v342 = vpop.f32.mrb[0].mxu0
    %343 = vmatprep.mubr.f32.mxu0 0.0
    %344 = vmatmul.mubr.f32.gmra.mrb[0].mxu0 %v178
    %v345 = vpop.f32.mrb[0].mxu0
    %v346 = vadd.f32 %v257, %v345
    %v347 = vpop.f32.mrb[0].mxu0
    %348 = vmatprep.mubr.f32.mxu0 0.0
    %349 = vmatmul.mubr.f32.gmra.mrb[0].mxu0 %v183
    %v350 = vpop.f32.mrb[0].mxu0
    %v351 = vadd.f32 %v257, %v350
    %v352 = vpop.f32.mrb[0].mxu0
    %353 = vmatprep.mubr.f32.mxu0 0.0
    %354 = vmatmul.mubr.f32.gmra.mrb[0].mxu0 %v188
    %v355 = vpop.f32.mrb[0].mxu0
    %v356 = vadd.f32 %v257, %v355
    %v357 = vpop.f32.mrb[0].mxu0
    %358 = vmatprep.mubr.f32.mxu0 0.0
    %359 = vmatmul.mubr.f32.gmra.mrb[0].mxu0 %v193
    %v360 = vpop.f32.mrb[0].mxu0
    %v361 = vadd.f32 %v257, %v360
    %v362 = vpop.f32.mrb[0].mxu0
    %363 = vmatprep.mubr.f32.mxu0 0.0
    %364 = vmatmul.mubr.f32.gmra.mrb[0].mxu0 %v198
    %v365 = vpop.f32.mrb[0].mxu0
    %v366 = vadd.f32 %v257, %v365
    %v367 = vpop.f32.mrb[0].mxu0
    %368 = vmatprep.mubr.f32.mxu0 0.0
    %369 = vmatmul.mubr.f32.gmra.mrb[0].mxu0 %v203
    %v370 = vpop.f32.mrb[0].mxu0
    %v371 = vadd.f32 %v257, %v370
    %v372 = vpop.f32.mrb[0].mxu0
    %373 = vmatprep.mubr.f32.mxu0 0.0
    %374 = vmatmul.mubr.f32.gmra.mrb[0].mxu0 %v208
    %v375 = vpop.f32.mrb[0].mxu0
    %v376 = vadd.f32 %v257, %v375
    %v377 = vpop.f32.mrb[0].mxu0
    %378 = vmatprep.mubr.f32.mxu0 0.0
    %379 = vmatmul.mubr.f32.gmra.mrb[0].mxu0 %v213
    %v380 = vpop.f32.mrb[0].mxu0
    %v381 = vadd.f32 %v257, %v380
    %v382 = vpop.f32.mrb[0].mxu0
    %383 = vmatprep.mubr.f32.mxu0 0.0
    %384 = vmatmul.mubr.f32.gmra.mrb[0].mxu0 %v218
    %v385 = vpop.f32.mrb[0].mxu0
    %v386 = vadd.f32 %v257, %v385
    %v387 = vpop.f32.mrb[0].mxu0
    %388 = vmatprep.mubr.f32.mxu0 0.0
    %389 = vmatmul.mubr.f32.gmra.mrb[0].mxu0 %v223
    %v390 = vpop.f32.mrb[0].mxu0
    %v391 = vadd.f32 %v257, %v390
    %v392 = vpop.f32.mrb[0].mxu0
    %393 = vmatprep.mubr.f32.mxu0 0.0
    %394 = vmatmul.mubr.f32.gmra.mrb[0].mxu0 %v228
    %v395 = vpop.f32.mrb[0].mxu0
    %v396 = vadd.f32 %v257, %v395
    %v397 = vpop.f32.mrb[0].mxu0
    %398 = vmatprep.mubr.f32.mxu0 0.0
    %399 = vmatmul.mubr.f32.gmra.mrb[0].mxu0 %v233
    %v400 = vpop.f32.mrb[0].mxu0
    %v401 = vadd.f32 %v257, %v400
    %v402 = vpop.f32.mrb[0].mxu0
    %403 = vdwg.mxu0
    %v404 = vmax.f32 %v326, 0.0
    %v405 = vmax.f32 %v331, 0.0
    %v406 = vmax.f32 %v336, 0.0
    %v407 = vmax.f32 %v341, 0.0
    %v408 = vmax.f32 %v346, 0.0
    %v409 = vmax.f32 %v351, 0.0
    %v410 = vmax.f32 %v356, 0.0
    %v411 = vmax.f32 %v361, 0.0
    %v412 = vmax.f32 %v366, 0.0
    %v413 = vmax.f32 %v371, 0.0
    %v414 = vmax.f32 %v376, 0.0
    %v415 = vmax.f32 %v381, 0.0
    %v416 = vmax.f32 %v386, 0.0
    %v417 = vmax.f32 %v391, 0.0
    %v418 = vmax.f32 %v396, 0.0
    %v419 = vmax.f32 %v401, 0.0
    %420 = vst [vmem:[#allocation8] sm:$0xff] %v404
    %421 = vst [vmem:[#allocation8 + $0x8] sm:$0xff] %v405
    %422 = vst [vmem:[#allocation8 + $0x10] sm:$0xff] %v406
    %423 = vst [vmem:[#allocation8 + $0x18] sm:$0xff] %v407
    %424 = vst [vmem:[#allocation8 + $0x20] sm:$0xff] %v408
    %425 = vst [vmem:[#allocation8 + $0x28] sm:$0xff] %v409
    %426 = vst [vmem:[#allocation8 + $0x30] sm:$0xff] %v410
    %427 = vst [vmem:[#allocation8 + $0x38] sm:$0xff] %v411
    %428 = vst [vmem:[#allocation8 + $0x40] sm:$0xff] %v412
    %429 = vst [vmem:[#allocation8 + $0x48] sm:$0xff] %v413
    %430 = vst [vmem:[#allocation8 + $0x50] sm:$0xff] %v414
    %431 = vst [vmem:[#allocation8 + $0x58] sm:$0xff] %v415
    %432 = vst [vmem:[#allocation8 + $0x60] sm:$0xff] %v416
    %433 = vst [vmem:[#allocation8 + $0x68] sm:$0xff] %v417
    %434 = vst [vmem:[#allocation8 + $0x70] sm:$0xff] %v418
    %435 = vst [vmem:[#allocation8 + $0x78] sm:$0xff] %v419
    // Predicated region
    $region30: #{tpu_custom_call.1} parent=1 // pred_check
      _
    $region31: #{tpu_custom_call.1} parent=1 // pred_check_branch
      %437 = sbr.rel (0) target = $region33
    $region32: #{tpu_custom_call.1} parent=1 // pred_region
      %s439 = ssub.s32 2048, 2048
      %440 = vsyncadd [#allocation4], %s439
      %s441 = sshll.u32 [#allocation8], 4
      %s442 = int_to_ptr.vmem [resolvable:$true] %s441
      %447 = dma.vmem_to_hbm [thread:$0]  %s442, 2048, %s4, [#allocation4], 128, 128, 8
    $region33: #{tpu_custom_call.1} parent=1 // pred_fallthru
      _
    // Predicated region
    $region34: #{tpu_custom_call.1} parent=1 // pred_check
      _
    $region35: #{tpu_custom_call.1} parent=1 // pred_check_branch
      %449 = sbr.rel (0) target = $region37
    $region36: #{tpu_custom_call.1} parent=1 // pred_region
      %450 = dma.done [#allocation4], 2048
    $region37: #{tpu_custom_call.1} parent=1 // pred_fallthru
      _
    %451 = vsyncpa [#allocation3], 1
    %452 = vsyncpa [#allocation6], 1
    %453 = vsyncpa [#allocation4], 1

</llo_original>
